<compile_context>
chip_gen: v6e
topology: v6e:2x2x1
jax: 0.10.0
libtpu: 0.0.40
codegen_flags: <defaults>
</compile_context>

<pallas_src>
import functools

import jax
import jax.numpy as jnp
from jax.experimental import pallas as pl
from jax.experimental.pallas import tpu as pltpu


def _noise_add_kernel(x_ref, z_ref, w_ref, o_ref, *, sigma):
    # Fold sigma into the (1, TN) weight row once per tile (cheap row op),
    # then a single fused multiply-add over the (TB, TN) tile.
    sw = jnp.float32(sigma) * w_ref[...]            # (1, TN)
    o_ref[...] = x_ref[...] + sw * z_ref[...]       # broadcasts over TB rows


def _pick_tile(dim, target, align):
    """Largest `align`-multiple divisor of `dim` that is <= target, else the full dim
    (a full-extent block is always a legal block shape)."""
    if dim <= target:
        return dim
    t = (target // align) * align
    while t >= align:
        if dim % t == 0:
            return t
        t -= align
    return dim


def noise_layer_forward(x, w, noise, *, sigma=0.01):
    """x: (B, N), w: (N,), noise: (B, N) ~ N(0,1)  ->  x + (sigma * w) * noise."""
    B, N = x.shape
    assert w.shape == (N,)
    assert noise.shape == (B, N)
    w2d = w.reshape(1, N).astype(x.dtype)

    # ~1 MiB f32 tiles: large enough to amortize the ~0.35 us per-grid-step
    # overhead, small enough that x/noise/out double-buffers fit easily even in
    # v7x's 64 MiB VMEM (32 MiB default scoped limit). Lane dim TN is kept a
    # multiple of 128 (or the full N) so stores stay unmasked.
    TB = _pick_tile(B, 512, 8)
    TN = _pick_tile(N, 512, 128)
    grid = (B // TB, N // TN)

    kernel = functools.partial(_noise_add_kernel, sigma=float(sigma))

    return pl.pallas_call(
        kernel,
        out_shape=jax.ShapeDtypeStruct((B, N), x.dtype),
        grid=grid,
        in_specs=[
            pl.BlockSpec((TB, TN), lambda i, j: (i, j)),   # x tile
            pl.BlockSpec((TB, TN), lambda i, j: (i, j)),   # noise tile
            pl.BlockSpec((1, TN), lambda i, j: (0, j)),    # w row, resident across batch axis
        ],
        out_specs=pl.BlockSpec((TB, TN), lambda i, j: (i, j)),
        compiler_params=pltpu.CompilerParams(
            dimension_semantics=("parallel", "parallel")),
        cost_estimate=pl.CostEstimate(
            flops=3 * B * N,
            transcendentals=0,
            bytes_accessed=4 * (3 * B * N + N)),
    )(x, noise, w2d)


if __name__ == "__main__":
    key = jax.random.PRNGKey(0)
    kx, kw, kn = jax.random.split(key, 3)

    B, N = 8, 128           # batch, inputs_count
    sigma = 0.01

    x = jax.random.normal(kx, (B, N), dtype=jnp.float32)
    w = jax.random.normal(kw, (N,), dtype=jnp.float32)        # torch.randn(inputs_count)
    noise = jax.random.normal(kn, (B, N), dtype=jnp.float32)  # torch.randn((B, N))

    out = noise_layer_forward(x, w, noise, sigma=sigma)
    out = jax.block_until_ready(out)

    # Reference: x + w * (sigma * noise)
    ref = x + w[None, :] * (sigma * noise)
    assert out.shape == (B, N) and out.dtype == jnp.float32
    assert jnp.allclose(out, ref, atol=1e-6, rtol=1e-6)

    print("KERNEL_OK")
</pallas_src>

<mosaic_0001>
module attributes {stable_mosaic.version = 11 : i64} {
  func.func @_noise_add_kernel(%arg0: i32, %arg1: i32, %arg2: memref<8x128xf32, #tpu.memory_space<vmem>>, %arg3: memref<8x128xf32, #tpu.memory_space<vmem>>, %arg4: memref<1x128xf32, #tpu.memory_space<vmem>>, %arg5: memref<8x128xf32, #tpu.memory_space<vmem>>) attributes {dimension_semantics = [#tpu.dimension_semantics<parallel>, #tpu.dimension_semantics<parallel>], iteration_bounds = array<i64: 1, 1>, scalar_prefetch = 0 : i64, scratch_operands = 0 : i64, tpu.core_type = #tpu.core_type<tc>, window_params = [{transform_indices = @transform_0, window_bounds = array<i64: 8, 128>}, {transform_indices = @transform_1, window_bounds = array<i64: 8, 128>}, {transform_indices = @transform_2, window_bounds = array<i64: 1, 128>}, {transform_indices = @transform_3, window_bounds = array<i64: 8, 128>}]} {
    %c0 = arith.constant 0 : index
    %c0_0 = arith.constant 0 : index
    %0 = vector.load %arg4[%c0, %c0_0] : memref<1x128xf32, #tpu.memory_space<vmem>>, vector<1x128xf32>
    %cst = arith.constant 0.00999999977 : f32
    %1 = vector.broadcast %cst : f32 to vector<1x128xf32>
    %2 = arith.mulf %1, %0 : vector<1x128xf32>
    %c0_1 = arith.constant 0 : index
    %c0_2 = arith.constant 0 : index
    %3 = vector.load %arg2[%c0_1, %c0_2] : memref<8x128xf32, #tpu.memory_space<vmem>>, vector<8x128xf32>
    %c0_3 = arith.constant 0 : index
    %c0_4 = arith.constant 0 : index
    %4 = vector.load %arg3[%c0_3, %c0_4] : memref<8x128xf32, #tpu.memory_space<vmem>>, vector<8x128xf32>
    %5 = vector.broadcast %2 : vector<1x128xf32> to vector<8x128xf32>
    %6 = arith.mulf %5, %4 : vector<8x128xf32>
    %7 = arith.addf %3, %6 : vector<8x128xf32>
    %c0_5 = arith.constant 0 : index
    %c0_6 = arith.constant 0 : index
    %8 = vector.load %arg5[%c0_5, %c0_6] : memref<8x128xf32, #tpu.memory_space<vmem>>, vector<8x128xf32>
    tpu.vector_store %arg5[%c0_5, %c0_6], %7 {strides = array<i32>} : memref<8x128xf32, #tpu.memory_space<vmem>>, vector<8x128xf32>,
    return
  }
  func.func @transform_0(%arg0: i32, %arg1: i32) -> (i32, i32) {
    %c0_i32 = arith.constant 0 : i32
    return %arg0, %arg1 : i32, i32
  }
  func.func @transform_1(%arg0: i32, %arg1: i32) -> (i32, i32) {
    %c0_i32 = arith.constant 0 : i32
    return %arg0, %arg1 : i32, i32
  }
  func.func @transform_2(%arg0: i32, %arg1: i32) -> (i32, i32) {
    %c0_i32 = arith.constant 0 : i32
    %c0_i32_0 = arith.constant 0 : i32
    return %c0_i32, %arg1 : i32, i32
  }
  func.func @transform_3(%arg0: i32, %arg1: i32) -> (i32, i32) {
    %c0_i32 = arith.constant 0 : i32
    return %arg0, %arg1 : i32, i32
  }
}

</mosaic_0001>

<llo_original>
// kernel: tpu_custom_call.1
$region0: #{tpu_custom_call.1}
  #allocation0 [shape = 'u32[]', space=smem, size = 0x4, offset = 0x4, fixed_abs, tag = 'smem constant byte address 0x4 - core index']
  #allocation1 [shape = 'u32[144,128]{1,0:T(1,128)}', space=vmem, size = 0x12000, scoped, tag = 'internal scratch']
  %s0 = inlined_call_operand.hbm [shape: f32[8,128], index: 0, kind: input, shape index: {}]
  %s1 = inlined_call_operand.hbm [shape: f32[8,128], index: 1, kind: input, shape index: {}]
  %s2 = inlined_call_operand.vmem [shape: f32[1,128], index: 2, kind: input, shape index: {}]
  %s3 = inlined_call_operand.hbm [shape: f32[8,128], index: 3, kind: output, shape index: {}]
  %s4 = sld [smem:[#allocation0]]
  $region30: #{tpu_custom_call.1} parent=0
    _
  %s6 = ssub.s32 1, %s4
  %s7 = scalar_select 0, %s6, %s4
  $region1: #{tpu_custom_call.1} parent=0
    #allocation2 [shape = 'u8[4096]{0}', space=vmem, size = 0x1000, scoped, tag = 'input window, operand 0, single buffered']
    #allocation3 [shape = 's32[1]{0}', space=sflag, size = 0x4, scoped, tag = 'scoped memory for tpu_custom_call.1']
    #allocation4 [shape = 's32[1]{0}', space=sflag, size = 0x4, scoped, tag = 'scoped memory for tpu_custom_call.1']
    #allocation5 [shape = 'u8[4096]{0}', space=vmem, size = 0x1000, scoped, tag = 'input window, operand 1, single buffered']
    #allocation6 [shape = 's32[1]{0}', space=sflag, size = 0x4, scoped, tag = 'scoped memory for tpu_custom_call.1']
    #allocation7 [shape = 'u8[4096]{0}', space=vmem, size = 0x1000, scoped, tag = 'output window, operand 0, single buffered']
    %8 = vsyncpa [#allocation3], 0
    %9 = vsyncpa [#allocation6], 0
    %10 = vsyncpa [#allocation4], 0
    // Predicated region
    $region2: #{tpu_custom_call.1} parent=1 // pred_check
      _
    $region3: #{tpu_custom_call.1} parent=1 // pred_check_branch
      %12 = sbr.rel (0) target = $region5
    $region4: #{tpu_custom_call.1} parent=1 // pred_region
      %s14 = ssub.s32 128, 128
      %15 = vsyncadd [#allocation3], %s14
      %s17 = sshll.u32 [#allocation2], 4
      %s18 = int_to_ptr.vmem [resolvable:$true] %s17
      %20 = dma.hbm_to_vmem [thread:$0]  %s0, 128, %s18, [#allocation3]
    $region5: #{tpu_custom_call.1} parent=1 // pred_fallthru
      _
    // Predicated region
    $region6: #{tpu_custom_call.1} parent=1 // pred_check
      _
    $region7: #{tpu_custom_call.1} parent=1 // pred_check_branch
      %22 = sbr.rel (0) target = $region9
    $region8: #{tpu_custom_call.1} parent=1 // pred_region
      %s24 = ssub.s32 128, 128
      %25 = vsyncadd [#allocation6], %s24
      %s27 = sshll.u32 [#allocation5], 4
      %s28 = int_to_ptr.vmem [resolvable:$true] %s27
      %30 = dma.hbm_to_vmem [thread:$0]  %s1, 128, %s28, [#allocation6]
    $region9: #{tpu_custom_call.1} parent=1 // pred_fallthru
      _
    // Predicated region
    $region10: #{tpu_custom_call.1} parent=1 // pred_check
      _
    $region11: #{tpu_custom_call.1} parent=1 // pred_check_branch
      %32 = sbr.rel (0) target = $region13
    $region12: #{tpu_custom_call.1} parent=1 // pred_region
      _
    $region13: #{tpu_custom_call.1} parent=1 // pred_fallthru
      _
    // Predicated region
    $region14: #{tpu_custom_call.1} parent=1 // pred_check
      _
    $region15: #{tpu_custom_call.1} parent=1 // pred_check_branch
      %34 = sbr.rel (0) target = $region17
    $region16: #{tpu_custom_call.1} parent=1 // pred_region
      %35 = dma.done [#allocation3], 128
    $region17: #{tpu_custom_call.1} parent=1 // pred_fallthru
      _
    // Predicated region
    $region18: #{tpu_custom_call.1} parent=1 // pred_check
      _
    $region19: #{tpu_custom_call.1} parent=1 // pred_check_branch
      %37 = sbr.rel (0) target = $region21
    $region20: #{tpu_custom_call.1} parent=1 // pred_region
      %38 = dma.done [#allocation6], 128
    $region21: #{tpu_custom_call.1} parent=1 // pred_fallthru
      _
    %v39 = vld [vmem:[%s2] sm:$0x1]
    %v40 = vmul.f32 %v39, 0.01
    %v41 = vld [vmem:[#allocation2] sm:$0xff]
    %v42 = vld [vmem:[#allocation5] sm:$0xff]
    %v44 = vlaneseq
    %v45 = vshrl.u32 %v44, 7
    %v46 = vsub.s32 0, %v45
    %v47 = vrot.slane %v40, %v46
    %v49 = vmul.f32 %v47, %v42
    %v50 = vadd.f32 %v41, %v49
    %51 = vst [vmem:[#allocation7] sm:$0xff] %v50
    // Predicated region
    $region22: #{tpu_custom_call.1} parent=1 // pred_check
      _
    $region23: #{tpu_custom_call.1} parent=1 // pred_check_branch
      %53 = sbr.rel (0) target = $region25
    $region24: #{tpu_custom_call.1} parent=1 // pred_region
      %s55 = ssub.s32 128, 128
      %56 = vsyncadd [#allocation4], %s55
      %s58 = sshll.u32 [#allocation7], 4
      %s59 = int_to_ptr.vmem [resolvable:$true] %s58
      %61 = dma.vmem_to_hbm [thread:$0]  %s59, 128, %s3, [#allocation4]
    $region25: #{tpu_custom_call.1} parent=1 // pred_fallthru
      _
    // Predicated region
    $region26: #{tpu_custom_call.1} parent=1 // pred_check
      _
    $region27: #{tpu_custom_call.1} parent=1 // pred_check_branch
      %63 = sbr.rel (0) target = $region29
    $region28: #{tpu_custom_call.1} parent=1 // pred_region
      %64 = dma.done [#allocation4], 128
    $region29: #{tpu_custom_call.1} parent=1 // pred_fallthru
      _
    %65 = vsyncpa [#allocation3], 1
    %66 = vsyncpa [#allocation6], 1
    %67 = vsyncpa [#allocation4], 1

</llo_original>
